<compile_context>
chip_gen: v7x
topology: tpu7x:2x2x1
jax: 0.10.0
libtpu: 0.0.40
codegen_flags: <defaults>
</compile_context>

<pallas_src>
import jax
import jax.numpy as jnp
import numpy as np
from jax.experimental import pallas as pl
from jax.experimental.pallas import tpu as pltpu

_VMEM_LIMIT = 32 * 1024 * 1024  # safe on v5e / v6e / v7x


# ----------------------------- Pallas kernels ------------------------------

def _make_conv_lrelu_stats_kernel(activation, negative_slope=0.2):
    """Fused LeakyReLU + 4x4/stride2/pad1 conv (+bias) + per-image channel
    sum / sum-of-squares, for one image per grid step.

    xs_ref:  (Hp, Wp, 4*Cin) f32  -- the 4 stride-2 parity phases of the
                                     zero-padded image stacked on channels,
                                     channel index = (ry*2+rx)*Cin + c.
    w_ref:   (4, 4*Cin, Cout) bf16 -- weight block per (py, px) offset,
                                      index = py*2 + px.
    b_ref:   (1, Cout)        f32
    y_ref:   (Ho, Wo, Cout)   f32
    sum_ref: (1, Cout)        f32
    ssq_ref: (1, Cout)        f32
    """

    def kernel(xs_ref, w_ref, b_ref, y_ref, sum_ref, ssq_ref):
        Ho, Wo, Cout = y_ref.shape
        Cin4 = xs_ref.shape[-1]
        M = Ho * Wo

        x = xs_ref[...]                                    # (Hp, Wp, 4*Cin) f32
        if activation:
            x = jnp.where(x >= 0, x, negative_slope * x)   # fused LeakyReLU
        x = x.astype(jnp.bfloat16)                         # MXU input format

        # Seed the accumulator with the bias (fuses the bias add for free).
        acc = jnp.broadcast_to(b_ref[...].astype(jnp.float32), (M, Cout))

        # 4 MXU matmuls with K = 4*Cin (one per (py, px) spatial offset).
        for py in range(2):
            for px in range(2):
                tap = x[py:py + Ho, px:px + Wo, :].reshape(M, Cin4)
                acc = acc + jnp.dot(tap, w_ref[py * 2 + px],
                                    preferred_element_type=jnp.float32)

        y_ref[...] = acc.reshape(Ho, Wo, Cout).astype(y_ref.dtype)
        sum_ref[...] = jnp.sum(acc, axis=0, keepdims=True)
        ssq_ref[...] = jnp.sum(acc * acc, axis=0, keepdims=True)

    return kernel


def _bn_affine_kernel(y_ref, scale_ref, shift_ref, o_ref):
    # y_ref: (Ho, Wo, Cout); scale/shift: (1, 1, Cout) -> per-channel affine.
    o_ref[...] = y_ref[...] * scale_ref[...] + shift_ref[...]


# ------------------------------- ConvBlock ----------------------------------

def init_params(key, in_ch, out_ch):
    """Mimics PyTorch defaults: Conv2d U(-1/sqrt(fan_in), ..), BN gamma=1/beta=0."""
    k1, k2 = jax.random.split(key)
    fan_in = in_ch * 4 * 4
    bound = 1.0 / np.sqrt(fan_in)
    w = jax.random.uniform(k1, (out_ch, in_ch, 4, 4), jnp.float32, -bound, bound)
    b = jax.random.uniform(k2, (out_ch,), jnp.float32, -bound, bound)
    gamma = jnp.ones((out_ch,), jnp.float32)
    beta = jnp.zeros((out_ch,), jnp.float32)
    return {'w': w, 'b': b, 'gamma': gamma, 'beta': beta}


def conv_block(x_nchw, p, activation=True, batch_norm=True, eps=1e-5):
    N, Cin, H, W = x_nchw.shape
    assert H % 2 == 0 and W % 2 == 0, "even spatial dims expected (k=4,s=2,p=1)"
    Cout = p['w'].shape[0]
    Ho, Wo = H // 2, W // 2
    Hp, Wp = Ho + 1, Wo + 1

    # NCHW -> NHWC, zero pad, space-to-depth the 4 stride-2 parity phases onto
    # the channel axis:  xstk[n, hy, hx, (ry*2+rx)*Cin + c]
    #                      = xpad[n, 2*hy + ry, 2*hx + rx, c]
    x = jnp.transpose(x_nchw, (0, 2, 3, 1))
    xpad = jnp.pad(x, ((0, 0), (1, 1), (1, 1), (0, 0)))
    xstk = xpad.reshape(N, Hp, 2, Wp, 2, Cin)
    xstk = jnp.transpose(xstk, (0, 1, 3, 2, 4, 5)).reshape(N, Hp, Wp, 4 * Cin)

    # Weight blocks: wblk[py*2+px, (ry*2+rx)*Cin + c, cout]
    #                  = w[cout, c, 2*py + ry, 2*px + rx]
    wr = p['w'].reshape(Cout, Cin, 2, 2, 2, 2)              # (cout,c,py,ry,px,rx)
    wblk = jnp.transpose(wr, (2, 4, 3, 5, 1, 0)).reshape(4, 4 * Cin, Cout)
    wblk = wblk.astype(jnp.bfloat16)
    bias = p['b'].reshape(1, Cout).astype(jnp.float32)

    conv_kernel = _make_conv_lrelu_stats_kernel(activation)
    y, psum, pssq = pl.pallas_call(
        conv_kernel,
        out_shape=(jax.ShapeDtypeStruct((N, Ho, Wo, Cout), jnp.float32),
                   jax.ShapeDtypeStruct((N, 1, Cout), jnp.float32),
                   jax.ShapeDtypeStruct((N, 1, Cout), jnp.float32)),
        grid=(N,),
        in_specs=[pl.BlockSpec((None, Hp, Wp, 4 * Cin),
                               lambda n: (n, 0, 0, 0)),
                  pl.BlockSpec((4, 4 * Cin, Cout), lambda n: (0, 0, 0)),
                  pl.BlockSpec((1, Cout), lambda n: (0, 0))],
        out_specs=(pl.BlockSpec((None, Ho, Wo, Cout), lambda n: (n, 0, 0, 0)),
                   pl.BlockSpec((None, 1, Cout), lambda n: (n, 0, 0)),
                   pl.BlockSpec((None, 1, Cout), lambda n: (n, 0, 0))),
        compiler_params=pltpu.CompilerParams(
            dimension_semantics=("parallel",),
            vmem_limit_bytes=_VMEM_LIMIT),
    )(xstk, wblk, bias)

    if not batch_norm:
        return jnp.transpose(y, (0, 3, 1, 2))

    # Batch statistics (training-mode BN, biased variance) -> per-channel affine.
    cnt = jnp.float32(N * Ho * Wo)
    mean = jnp.sum(psum, axis=0).reshape(Cout) / cnt
    ex2 = jnp.sum(pssq, axis=0).reshape(Cout) / cnt
    var = jnp.maximum(ex2 - mean * mean, 0.0)
    inv = jax.lax.rsqrt(var + eps)
    scale = (p['gamma'] * inv).reshape(1, 1, Cout).astype(jnp.float32)
    shift = (p['beta'] - mean * p['gamma'] * inv).reshape(1, 1, Cout)
    shift = shift.astype(jnp.float32)

    out = pl.pallas_call(
        _bn_affine_kernel,
        out_shape=jax.ShapeDtypeStruct((N, Ho, Wo, Cout), jnp.float32),
        grid=(N,),
        in_specs=[pl.BlockSpec((None, Ho, Wo, Cout), lambda n: (n, 0, 0, 0)),
                  pl.BlockSpec((1, 1, Cout), lambda n: (0, 0, 0)),
                  pl.BlockSpec((1, 1, Cout), lambda n: (0, 0, 0))],
        out_specs=pl.BlockSpec((None, Ho, Wo, Cout), lambda n: (n, 0, 0, 0)),
        input_output_aliases={0: 0},   # reuse the conv-output HBM buffer
        compiler_params=pltpu.CompilerParams(
            dimension_semantics=("parallel",),
            vmem_limit_bytes=_VMEM_LIMIT),
    )(y, scale, shift)

    return jnp.transpose(out, (0, 3, 1, 2))   # NHWC -> NCHW


# ----------------------------- pure-JAX reference ----------------------------

def conv_block_ref(x, p, activation=True, batch_norm=True, eps=1e-5):
    h = jnp.where(x >= 0, x, 0.2 * x) if activation else x
    y = jax.lax.conv_general_dilated(
        h, p['w'], window_strides=(2, 2), padding=((1, 1), (1, 1)),
        dimension_numbers=('NCHW', 'OIHW', 'NCHW'))
    y = y + p['b'].reshape(1, -1, 1, 1)
    if batch_norm:
        mean = jnp.mean(y, axis=(0, 2, 3), keepdims=True)
        var = jnp.var(y, axis=(0, 2, 3), keepdims=True)      # biased, as torch
        y = ((y - mean) * jax.lax.rsqrt(var + eps)
             * p['gamma'].reshape(1, -1, 1, 1)
             + p['beta'].reshape(1, -1, 1, 1))
    return y


if __name__ == "__main__":
    key = jax.random.PRNGKey(0)
    kx, kp = jax.random.split(key)
    N, Cin, H, W = 2, 4, 16, 16
    Cout = 8
    x = jax.random.normal(kx, (N, Cin, H, W), jnp.float32)
    params = init_params(kp, Cin, Cout)

    out = jax.block_until_ready(conv_block(x, params))
    assert out.shape == (N, Cout, H // 2, W // 2), out.shape

    ref = jax.block_until_ready(conv_block_ref(x, params))
    np.testing.assert_allclose(np.asarray(out), np.asarray(ref),
                               rtol=2e-2, atol=2e-2)
    print("KERNEL_OK")
</pallas_src>

<mosaic_0001>
module attributes {stable_mosaic.version = 11 : i64} {
  func.func @kernel(%arg0: i32, %arg1: memref<1x9x9x16xf32, #tpu.memory_space<vmem>>, %arg2: memref<4x16x8xbf16, #tpu.memory_space<vmem>>, %arg3: memref<1x8xf32, #tpu.memory_space<vmem>>, %arg4: memref<1x8x8x8xf32, #tpu.memory_space<vmem>>, %arg5: memref<1x1x8xf32, #tpu.memory_space<vmem>>, %arg6: memref<1x1x8xf32, #tpu.memory_space<vmem>>) attributes {dimension_semantics = [#tpu.dimension_semantics<parallel>], iteration_bounds = array<i64: 2>, scalar_prefetch = 0 : i64, scratch_operands = 0 : i64, tpu.core_type = #tpu.core_type<tc>, window_params = [{transform_indices = @transform_0, window_bounds = array<i64: 1, 9, 9, 16>}, {pipeline_mode = #tpu.pipeline_mode<synchronous>, transform_indices = @transform_1, window_bounds = array<i64: 4, 16, 8>}, {pipeline_mode = #tpu.pipeline_mode<synchronous>, transform_indices = @transform_2, window_bounds = array<i64: 1, 8>}, {transform_indices = @transform_3, window_bounds = array<i64: 1, 8, 8, 8>}, {transform_indices = @transform_4, window_bounds = array<i64: 1, 1, 8>}, {transform_indices = @transform_5, window_bounds = array<i64: 1, 1, 8>}]} {
    %c0 = arith.constant 0 : index
    %c0_0 = arith.constant 0 : index
    %c0_1 = arith.constant 0 : index
    %c0_2 = arith.constant 0 : index
    %0 = vector.load %arg1[%c0, %c0_0, %c0_1, %c0_2] : memref<1x9x9x16xf32, #tpu.memory_space<vmem>>, vector<1x9x9x16xf32>
    %1 = vector.shape_cast %0 : vector<1x9x9x16xf32> to vector<9x9x16xf32>
    %cst = arith.constant 0.000000e+00 : f32
    %2 = vector.broadcast %cst : f32 to vector<9x9x16xf32>
    %3 = arith.cmpf oge, %1, %2 : vector<9x9x16xf32>
    %cst_3 = arith.constant 2.000000e-01 : f32
    %4 = vector.broadcast %cst_3 : f32 to vector<9x9x16xf32>
    %5 = arith.mulf %4, %1 : vector<9x9x16xf32>
    %6 = arith.select %3, %1, %5 : vector<9x9x16xi1>, vector<9x9x16xf32>
    %7 = arith.truncf %6 : vector<9x9x16xf32> to vector<9x9x16xbf16>
    %c0_4 = arith.constant 0 : index
    %c0_5 = arith.constant 0 : index
    %8 = vector.load %arg3[%c0_4, %c0_5] : memref<1x8xf32, #tpu.memory_space<vmem>>, vector<1x8xf32>
    %9 = vector.shape_cast %8 : vector<1x8xf32> to vector<1x8xf32>
    %10 = vector.broadcast %9 : vector<1x8xf32> to vector<64x8xf32>
    %11 = vector.extract_strided_slice %7 {offsets = [0, 0, 0], sizes = [8, 8, 16], strides = [1, 1, 1]} : vector<9x9x16xbf16> to vector<8x8x16xbf16>
    %12 = vector.shape_cast %11 : vector<8x8x16xbf16> to vector<64x16xbf16>
    %c0_6 = arith.constant 0 : index
    %c0_7 = arith.constant 0 : index
    %c0_8 = arith.constant 0 : index
    %13 = vector.load %arg2[%c0_6, %c0_7, %c0_8] : memref<4x16x8xbf16, #tpu.memory_space<vmem>>, vector<1x16x8xbf16>
    %14 = vector.shape_cast %13 : vector<1x16x8xbf16> to vector<16x8xbf16>
    %cst_9 = arith.constant dense<0.000000e+00> : vector<64x8xf32>
    %15 = tpu.matmul %12, %14, %cst_9 {dimension_numbers = #tpu.dot_dimension_numbers<[1], [0], [0], [1], [0, 0, 1, 1], [], []>} : vector<64x16xbf16>, vector<16x8xbf16>, vector<64x8xf32> -> vector<64x8xf32>
    %16 = arith.addf %10, %15 : vector<64x8xf32>
    %17 = vector.extract_strided_slice %7 {offsets = [0, 1, 0], sizes = [8, 8, 16], strides = [1, 1, 1]} : vector<9x9x16xbf16> to vector<8x8x16xbf16>
    %18 = vector.shape_cast %17 : vector<8x8x16xbf16> to vector<64x16xbf16>
    %c1 = arith.constant 1 : index
    %c0_10 = arith.constant 0 : index
    %c0_11 = arith.constant 0 : index
    %19 = vector.load %arg2[%c1, %c0_10, %c0_11] : memref<4x16x8xbf16, #tpu.memory_space<vmem>>, vector<1x16x8xbf16>
    %20 = vector.shape_cast %19 : vector<1x16x8xbf16> to vector<16x8xbf16>
    %cst_12 = arith.constant dense<0.000000e+00> : vector<64x8xf32>
    %21 = tpu.matmul %18, %20, %cst_12 {dimension_numbers = #tpu.dot_dimension_numbers<[1], [0], [0], [1], [0, 0, 1, 1], [], []>} : vector<64x16xbf16>, vector<16x8xbf16>, vector<64x8xf32> -> vector<64x8xf32>
    %22 = arith.addf %16, %21 : vector<64x8xf32>
    %23 = vector.extract_strided_slice %7 {offsets = [1, 0, 0], sizes = [8, 8, 16], strides = [1, 1, 1]} : vector<9x9x16xbf16> to vector<8x8x16xbf16>
    %24 = vector.shape_cast %23 : vector<8x8x16xbf16> to vector<64x16xbf16>
    %c2 = arith.constant 2 : index
    %c0_13 = arith.constant 0 : index
    %c0_14 = arith.constant 0 : index
    %25 = vector.load %arg2[%c2, %c0_13, %c0_14] : memref<4x16x8xbf16, #tpu.memory_space<vmem>>, vector<1x16x8xbf16>
    %26 = vector.shape_cast %25 : vector<1x16x8xbf16> to vector<16x8xbf16>
    %cst_15 = arith.constant dense<0.000000e+00> : vector<64x8xf32>
    %27 = tpu.matmul %24, %26, %cst_15 {dimension_numbers = #tpu.dot_dimension_numbers<[1], [0], [0], [1], [0, 0, 1, 1], [], []>} : vector<64x16xbf16>, vector<16x8xbf16>, vector<64x8xf32> -> vector<64x8xf32>
    %28 = arith.addf %22, %27 : vector<64x8xf32>
    %29 = vector.extract_strided_slice %7 {offsets = [1, 1, 0], sizes = [8, 8, 16], strides = [1, 1, 1]} : vector<9x9x16xbf16> to vector<8x8x16xbf16>
    %30 = vector.shape_cast %29 : vector<8x8x16xbf16> to vector<64x16xbf16>
    %c3 = arith.constant 3 : index
    %c0_16 = arith.constant 0 : index
    %c0_17 = arith.constant 0 : index
    %31 = vector.load %arg2[%c3, %c0_16, %c0_17] : memref<4x16x8xbf16, #tpu.memory_space<vmem>>, vector<1x16x8xbf16>
    %32 = vector.shape_cast %31 : vector<1x16x8xbf16> to vector<16x8xbf16>
    %cst_18 = arith.constant dense<0.000000e+00> : vector<64x8xf32>
    %33 = tpu.matmul %30, %32, %cst_18 {dimension_numbers = #tpu.dot_dimension_numbers<[1], [0], [0], [1], [0, 0, 1, 1], [], []>} : vector<64x16xbf16>, vector<16x8xbf16>, vector<64x8xf32> -> vector<64x8xf32>
    %34 = arith.addf %28, %33 : vector<64x8xf32>
    %35 = vector.shape_cast %34 : vector<64x8xf32> to vector<8x8x8xf32>
    %c0_19 = arith.constant 0 : index
    %c0_20 = arith.constant 0 : index
    %c0_21 = arith.constant 0 : index
    %c0_22 = arith.constant 0 : index
    %36 = vector.load %arg4[%c0_19, %c0_20, %c0_21, %c0_22] : memref<1x8x8x8xf32, #tpu.memory_space<vmem>>, vector<1x8x8x8xf32>
    %37 = vector.shape_cast %36 : vector<1x8x8x8xf32> to vector<8x8x8xf32>
    %38 = vector.shape_cast %35 : vector<8x8x8xf32> to vector<1x8x8x8xf32>
    tpu.vector_store %arg4[%c0_19, %c0_20, %c0_21, %c0_22], %38 {strides = array<i32>} : memref<1x8x8x8xf32, #tpu.memory_space<vmem>>, vector<1x8x8x8xf32>,
    %cst_23 = arith.constant dense<0.000000e+00> : vector<8xf32>
    %39 = vector.multi_reduction <add>, %34, %cst_23 [0] : vector<64x8xf32> to vector<8xf32>
    %40 = vector.shape_cast %39 : vector<8xf32> to vector<1x8xf32>
    %c0_24 = arith.constant 0 : index
    %c0_25 = arith.constant 0 : index
    %c0_26 = arith.constant 0 : index
    %41 = vector.load %arg5[%c0_24, %c0_25, %c0_26] : memref<1x1x8xf32, #tpu.memory_space<vmem>>, vector<1x1x8xf32>
    %42 = vector.shape_cast %41 : vector<1x1x8xf32> to vector<1x8xf32>
    %43 = vector.shape_cast %40 : vector<1x8xf32> to vector<1x1x8xf32>
    tpu.vector_store %arg5[%c0_24, %c0_25, %c0_26], %43 {strides = array<i32>} : memref<1x1x8xf32, #tpu.memory_space<vmem>>, vector<1x1x8xf32>,
    %44 = arith.mulf %34, %34 : vector<64x8xf32>
    %cst_27 = arith.constant dense<0.000000e+00> : vector<8xf32>
    %45 = vector.multi_reduction <add>, %44, %cst_27 [0] : vector<64x8xf32> to vector<8xf32>
    %46 = vector.shape_cast %45 : vector<8xf32> to vector<1x8xf32>
    %c0_28 = arith.constant 0 : index
    %c0_29 = arith.constant 0 : index
    %c0_30 = arith.constant 0 : index
    %47 = vector.load %arg6[%c0_28, %c0_29, %c0_30] : memref<1x1x8xf32, #tpu.memory_space<vmem>>, vector<1x1x8xf32>
    %48 = vector.shape_cast %47 : vector<1x1x8xf32> to vector<1x8xf32>
    %49 = vector.shape_cast %46 : vector<1x8xf32> to vector<1x1x8xf32>
    tpu.vector_store %arg6[%c0_28, %c0_29, %c0_30], %49 {strides = array<i32>} : memref<1x1x8xf32, #tpu.memory_space<vmem>>, vector<1x1x8xf32>,
    return
  }
  func.func @transform_0(%arg0: i32) -> (i32, i32, i32, i32) {
    %c0_i32 = arith.constant 0 : i32
    %c0_i32_0 = arith.constant 0 : i32
    %c0_i32_1 = arith.constant 0 : i32
    %c0_i32_2 = arith.constant 0 : i32
    return %arg0, %c0_i32, %c0_i32_0, %c0_i32_1 : i32, i32, i32, i32
  }
  func.func @transform_1(%arg0: i32) -> (i32, i32, i32) {
    %c0_i32 = arith.constant 0 : i32
    %c0_i32_0 = arith.constant 0 : i32
    %c0_i32_1 = arith.constant 0 : i32
    %c0_i32_2 = arith.constant 0 : i32
    return %c0_i32, %c0_i32_0, %c0_i32_1 : i32, i32, i32
  }
  func.func @transform_2(%arg0: i32) -> (i32, i32) {
    %c0_i32 = arith.constant 0 : i32
    %c0_i32_0 = arith.constant 0 : i32
    %c0_i32_1 = arith.constant 0 : i32
    return %c0_i32, %c0_i32_0 : i32, i32
  }
  func.func @transform_3(%arg0: i32) -> (i32, i32, i32, i32) {
    %c0_i32 = arith.constant 0 : i32
    %c0_i32_0 = arith.constant 0 : i32
    %c0_i32_1 = arith.constant 0 : i32
    %c0_i32_2 = arith.constant 0 : i32
    return %arg0, %c0_i32, %c0_i32_0, %c0_i32_1 : i32, i32, i32, i32
  }
  func.func @transform_4(%arg0: i32) -> (i32, i32, i32) {
    %c0_i32 = arith.constant 0 : i32
    %c0_i32_0 = arith.constant 0 : i32
    %c0_i32_1 = arith.constant 0 : i32
    return %arg0, %c0_i32, %c0_i32_0 : i32, i32, i32
  }
  func.func @transform_5(%arg0: i32) -> (i32, i32, i32) {
    %c0_i32 = arith.constant 0 : i32
    %c0_i32_0 = arith.constant 0 : i32
    %c0_i32_1 = arith.constant 0 : i32
    return %arg0, %c0_i32, %c0_i32_0 : i32, i32, i32
  }
}

</mosaic_0001>

<llo_original>
// kernel: tpu_custom_call.1
$region0: #{tpu_custom_call.1}
  #allocation0 [shape = 'u32[]', space=smem, size = 0x4, offset = 0x4, fixed_abs, tag = 'smem constant byte address 0x4 - core index']
  #allocation1 [shape = 'u32[144,128]{1,0:T(1,128)}', space=vmem, size = 0x12000, scoped, tag = 'internal scratch']
  %s0 = inlined_call_operand.vmem [shape: f32[2,9,9,16], index: 0, kind: input, shape index: {}]
  %s1 = inlined_call_operand.vmem [shape: bf16[4,16,8], index: 1, kind: input, shape index: {}]
  %s2 = inlined_call_operand.vmem [shape: f32[1,8], index: 2, kind: input, shape index: {}]
  %s3 = inlined_call_operand.hbm [shape: f32[2,8,8,8], index: 3, kind: output, shape index: {0}]
  %s4 = inlined_call_operand.hbm [shape: f32[2,1,8], index: 4, kind: output, shape index: {1}]
  %s5 = inlined_call_operand.hbm [shape: f32[2,1,8], index: 5, kind: output, shape index: {2}]
  %6 = xla_tuple %s3, %s4, %s5
  %s7 = sld [smem:[#allocation0]]
  $region61: #{tpu_custom_call.1} parent=0
    _
  %s9 = ssub.s32 1, %s7
  %s10 = scalar_select 0, %s9, %s7
  $region1: #{tpu_custom_call.1} parent=0
    #allocation2 [shape = 'u8[65536]{0}', space=vmem, size = 0x10000, scoped, tag = 'output window, operand 0']
    #allocation3 [shape = 's32[2]{0}', space=sflag, size = 0x8, scoped, tag = 'scoped memory for tpu_custom_call.1']
    #allocation4 [shape = 'u8[1024]{0}', space=vmem, size = 0x400, scoped, tag = 'output window, operand 1']
    #allocation5 [shape = 's32[2]{0}', space=sflag, size = 0x8, scoped, tag = 'scoped memory for tpu_custom_call.1']
    #allocation6 [shape = 'u8[1024]{0}', space=vmem, size = 0x400, scoped, tag = 'output window, operand 2']
    %11 = vsyncpa [#allocation3], 0
    %s12 = scalar_lea.sflag [#allocation3], 1
    %13 = vsyncpa %s12, 0
    %14 = vsyncpa [#allocation5], 0
    %s15 = scalar_lea.sflag [#allocation5], 1
    %16 = vsyncpa %s15, 0
    loop: start=0, step=1, limit=4
    $region2: #{tpu_custom_call.1} parent=1 // loop_pre_header
      _
    $region3: #{tpu_custom_call.1} parent=1 // loop_header
      %s18 = sphi 0, %s22
      %p19 = scmp.ge.s32.totalorder %s18, 4
      %s28 = sphi 0, %s30
      %s31 = sphi 0, %s28
      %s32 = sphi 0, %s31
      %s48 = sphi 0, %s32
      %s52 = sphi 0, %s52
      %s54 = sphi 0, %s52
      %s55 = sphi 0, %s54
      %s69 = sphi 0, %s55
      %s73 = sphi 0, %s73
      %s75 = sphi 0, %s73
      %s76 = sphi 0, %s75
      %s90 = sphi 0, %s76
      %s96 = sphi 0, %s98
      %s99 = sphi 0, %s96
      %s100 = sphi 0, %s99
      %s116 = sphi 0, %s100
      %s122 = sphi 0, %s124
      %s125 = sphi 0, %s122
      %s126 = sphi 0, %s125
      %s142 = sphi 0, %s126
      %s148 = sphi 0, %s150
      %s151 = sphi 0, %s148
      %s152 = sphi 0, %s151
      %s168 = sphi 0, %s152
    $region4: #{tpu_custom_call.1} parent=1 // loop_header_branch
      %21 = sbr.rel (%p19) target = $region8
    $region5: #{tpu_custom_call.1} parent=1 // loop_body
      %s23 = ssub.s32 %s18, 1
      %s24 = ssub.s32 %s18, 2
      %s25 = sadd.s32 %s18, 1
      %s26 = ssub.s32 %s18, %s25
      %p27 = scmp.eq.s32.totalorder %s26, 0
      %s29 = sadd.s32 %s28, 1
      %s30 = scalar_select %p27, %s28, %s29
      %p33 = pneg %p27
      %p34 = scmp.eq.s32.totalorder %s18, 1
      %p35 = por %p33, %p34
      %p36 = scmp.ne.s32.totalorder %s28, %s31
      %p37 = scmp.eq.s32.totalorder %s18, 0
      %p38 = por %p36, %p37
      %p39 = scmp.ne.s32.totalorder %s28, %s31
      %p40 = scmp.eq.s32.totalorder %s23, 1
      %p41 = por %p39, %p40
      %p42 = scmp.ne.s32.totalorder %s31, %s32
      %p43 = scmp.eq.s32.totalorder %s23, 0
      %p44 = por %p42, %p43
      %p45 = scmp.ne.s32.totalorder %s31, %s32
      %p46 = scmp.eq.s32.totalorder %s24, 1
      %p47 = por %p45, %p46
      %p49 = scmp.ne.s32.totalorder %s32, %s48
      %p50 = scmp.eq.s32.totalorder %s24, 0
      %p51 = por %p49, %p50
      %s53 = sadd.s32 %s52, 1
      %p56 = scmp.eq.s32.totalorder %s18, 1
      %p57 = scmp.ne.s32.totalorder %s52, %s54
      %p58 = scmp.eq.s32.totalorder %s18, 0
      %p59 = por %p57, %p58
      %p60 = scmp.ne.s32.totalorder %s52, %s54
      %p61 = scmp.eq.s32.totalorder %s23, 1
      %p62 = por %p60, %p61
      %p63 = scmp.ne.s32.totalorder %s54, %s55
      %p64 = scmp.eq.s32.totalorder %s23, 0
      %p65 = por %p63, %p64
      %p66 = scmp.ne.s32.totalorder %s54, %s55
      %p67 = scmp.eq.s32.totalorder %s24, 1
      %p68 = por %p66, %p67
      %p70 = scmp.ne.s32.totalorder %s55, %s69
      %p71 = scmp.eq.s32.totalorder %s24, 0
      %p72 = por %p70, %p71
      %s74 = sadd.s32 %s73, 1
      %p77 = scmp.eq.s32.totalorder %s18, 1
      %p78 = scmp.ne.s32.totalorder %s73, %s75
      %p79 = scmp.eq.s32.totalorder %s18, 0
      %p80 = por %p78, %p79
      %p81 = scmp.ne.s32.totalorder %s73, %s75
      %p82 = scmp.eq.s32.totalorder %s23, 1
      %p83 = por %p81, %p82
      %p84 = scmp.ne.s32.totalorder %s75, %s76
      %p85 = scmp.eq.s32.totalorder %s23, 0
      %p86 = por %p84, %p85
      %p87 = scmp.ne.s32.totalorder %s75, %s76
      %p88 = scmp.eq.s32.totalorder %s24, 1
      %p89 = por %p87, %p88
      %p91 = scmp.ne.s32.totalorder %s76, %s90
      %p92 = scmp.eq.s32.totalorder %s24, 0
      %p93 = por %p91, %p92
      %s94 = ssub.s32 %s18, %s25
      %p95 = scmp.eq.s32.totalorder %s94, 0
      %s97 = sadd.s32 %s96, 1
      %s98 = scalar_select %p95, %s96, %s97
      %p101 = pneg %p95
      %p102 = scmp.eq.s32.totalorder %s18, 1
      %p103 = por %p101, %p102
      %p104 = scmp.ne.s32.totalorder %s96, %s99
      %p105 = scmp.eq.s32.totalorder %s18, 0
      %p106 = por %p104, %p105
      %p107 = scmp.ne.s32.totalorder %s96, %s99
      %p108 = scmp.eq.s32.totalorder %s23, 1
      %p109 = por %p107, %p108
      %p110 = scmp.ne.s32.totalorder %s99, %s100
      %p111 = scmp.eq.s32.totalorder %s23, 0
      %p112 = por %p110, %p111
      %p113 = scmp.ne.s32.totalorder %s99, %s100
      %p114 = scmp.eq.s32.totalorder %s24, 1
      %p115 = por %p113, %p114
      %p117 = scmp.ne.s32.totalorder %s100, %s116
      %p118 = scmp.eq.s32.totalorder %s24, 0
      %p119 = por %p117, %p118
      %s120 = ssub.s32 %s18, %s25
      %p121 = scmp.eq.s32.totalorder %s120, 0
      %s123 = sadd.s32 %s122, 1
      %s124 = scalar_select %p121, %s122, %s123
      %p127 = pneg %p121
      %p128 = scmp.eq.s32.totalorder %s18, 1
      %p129 = por %p127, %p128
      %p130 = scmp.ne.s32.totalorder %s122, %s125
      %p131 = scmp.eq.s32.totalorder %s18, 0
      %p132 = por %p130, %p131
      %p133 = scmp.ne.s32.totalorder %s122, %s125
      %p134 = scmp.eq.s32.totalorder %s23, 1
      %p135 = por %p133, %p134
      %p136 = scmp.ne.s32.totalorder %s125, %s126
      %p137 = scmp.eq.s32.totalorder %s23, 0
      %p138 = por %p136, %p137
      %p139 = scmp.ne.s32.totalorder %s125, %s126
      %p140 = scmp.eq.s32.totalorder %s24, 1
      %p141 = por %p139, %p140
      %p143 = scmp.ne.s32.totalorder %s126, %s142
      %p144 = scmp.eq.s32.totalorder %s24, 0
      %p145 = por %p143, %p144
      %s146 = ssub.s32 %s18, %s25
      %p147 = scmp.eq.s32.totalorder %s146, 0
      %s149 = sadd.s32 %s148, 1
      %s150 = scalar_select %p147, %s148, %s149
      %p153 = pneg %p147
      %p154 = scmp.eq.s32.totalorder %s18, 1
      %p155 = por %p153, %p154
      %p156 = scmp.ne.s32.totalorder %s148, %s151
      %p157 = scmp.eq.s32.totalorder %s18, 0
      %p158 = por %p156, %p157
      %p159 = scmp.ne.s32.totalorder %s148, %s151
      %p160 = scmp.eq.s32.totalorder %s23, 1
      %p161 = por %p159, %p160
      %p162 = scmp.ne.s32.totalorder %s151, %s152
      %p163 = scmp.eq.s32.totalorder %s23, 0
      %p164 = por %p162, %p163
      %p165 = scmp.ne.s32.totalorder %s151, %s152
      %p166 = scmp.eq.s32.totalorder %s24, 1
      %p167 = por %p165, %p166
      %p169 = scmp.ne.s32.totalorder %s152, %s168
      %p170 = scmp.eq.s32.totalorder %s24, 0
      %p171 = por %p169, %p170
      %p172 = scmp.le.s32.totalorder 1, %s18
      %p173 = scmp.lt.s32.totalorder %s18, 3
      %p174 = pnand %p172, %p173
      %p175 = pneg %p174
      // Predicated region
      $region9: #{tpu_custom_call.1} parent=5 // pred_check
        _
      $region10: #{tpu_custom_call.1} parent=5 // pred_check_branch
        %177 = sbr.rel (%p174) target = $region12
      $region11: #{tpu_custom_call.1} parent=5 // pred_region
        %s178 = ssub.s32 %s18, 1
        // Predicated region
        $region13: #{tpu_custom_call.1} parent=11 // pred_check
          %p179 = pneg %p65
        $region14: #{tpu_custom_call.1} parent=11 // pred_check_branch
          %181 = sbr.rel (%p179) target = $region16
        $region15: #{tpu_custom_call.1} parent=11 // pred_region
          _
        $region16: #{tpu_custom_call.1} parent=11 // pred_fallthru
          _
        // Predicated region
        $region17: #{tpu_custom_call.1} parent=11 // pred_check
          %p182 = pneg %p86
        $region18: #{tpu_custom_call.1} parent=11 // pred_check_branch
          %184 = sbr.rel (%p182) target = $region20
        $region19: #{tpu_custom_call.1} parent=11 // pred_region
          _
        $region20: #{tpu_custom_call.1} parent=11 // pred_fallthru
          _
      $region12: #{tpu_custom_call.1} parent=5 // pred_fallthru
        _
      %p185 = scmp.lt.s32.totalorder %s18, 2
      // Predicated region
      $region21: #{tpu_custom_call.1} parent=5 // pred_check
        %p186 = pneg %p185
      $region22: #{tpu_custom_call.1} parent=5 // pred_check_branch
        %188 = sbr.rel (%p186) target = $region24
      $region23: #{tpu_custom_call.1} parent=5 // pred_region
        // Predicated region
        $region25: #{tpu_custom_call.1} parent=23 // pred_check
          %p189 = pneg %p38
        $region26: #{tpu_custom_call.1} parent=23 // pred_check_branch
          %191 = sbr.rel (%p189) target = $region28
        $region27: #{tpu_custom_call.1} parent=23 // pred_region
          %p192 = scmp.lt.s32.totalorder %s18, 1
          %s193 = scalar_select %p192, %s18, 1
          %s194 = smul.addr %s193, 18
          %s195 = smul.addr %s194, 8
          %s196 = scalar_lea.vmem %s0, %s195
        $region28: #{tpu_custom_call.1} parent=23 // pred_fallthru
          _
      $region24: #{tpu_custom_call.1} parent=5 // pred_fallthru
        _
      %p197 = scmp.le.s32.totalorder 1, %s18
      %p198 = scmp.lt.s32.totalorder %s18, 3
      %p199 = pnand %p197, %p198
      %p200 = pneg %p199
      // Predicated region
      $region29: #{tpu_custom_call.1} parent=5 // pred_check
        _
      $region30: #{tpu_custom_call.1} parent=5 // pred_check_branch
        %202 = sbr.rel (%p199) target = $region32
      $region31: #{tpu_custom_call.1} parent=5 // pred_region
        %s203 = ssub.s32 %s18, 1
        %p204 = scmp.lt.s32.totalorder %s23, 1
        %s205 = scalar_select %p204, %s23, 1
        %s206 = smul.addr %s205, 18
        %s207 = smul.addr %s206, 8
        %s208 = scalar_lea.vmem %s0, %s207
        %p209 = pneg %p44
        %p210 = pneg %p41
        %p211 = pneg %p65
        %p212 = pneg %p62
        %p213 = pneg %p86
        %p214 = pneg %p83
        %p215 = pneg %p112
        %p216 = pneg %p109
        %s217 = sand.u32 %s99, 1
        %s218 = scalar_lea.sflag [#allocation3], %s217
        %s219 = sand.u32 %s99, 1
        %s220 = smul.addr %s219, 64
        %s221 = scalar_lea.vmem [#allocation2], %s220
        %p222 = pneg %p138
        %p223 = pneg %p135
        %s224 = sand.u32 %s23, 1
        %s225 = scalar_lea.sflag [#allocation5], %s224
        %s226 = sand.u32 %s125, 1
        %s227 = scalar_lea.vmem [#allocation4], %s226
        %p228 = pneg %p164
        %p229 = pneg %p161
        %s230 = sand.u32 %s23, 1
        %s231 = scalar_lea.sflag [#allocation5], %s230
        %s232 = sand.u32 %s151, 1
        %s233 = scalar_lea.vmem [#allocation6], %s232
        %p234 = scmp.lt.s32.totalorder %s23, 1
        %s235 = scalar_select %p234, %s23, 1
        %s236 = smul.addr %s235, 18
        %s237 = smul.addr %s236, 8
        %s238 = scalar_lea.vmem %s0, %s237
        %v240 = vld [vmem:[%s238] sm:$0xff]
        %v241 = vld [vmem:[%s238 + $0x8] sm:$0x1]
        %v242 = vld [vmem:[%s238 + $0x10] sm:$0xff]
        %v243 = vld [vmem:[%s238 + $0x18] sm:$0x1]
        %v244 = vld [vmem:[%s238 + $0x20] sm:$0xff]
        %v245 = vld [vmem:[%s238 + $0x28] sm:$0x1]
        %v246 = vld [vmem:[%s238 + $0x30] sm:$0xff]
        %v247 = vld [vmem:[%s238 + $0x38] sm:$0x1]
        %v248 = vld [vmem:[%s238 + $0x40] sm:$0xff]
        %v249 = vld [vmem:[%s238 + $0x48] sm:$0x1]
        %v250 = vld [vmem:[%s238 + $0x50] sm:$0xff]
        %v251 = vld [vmem:[%s238 + $0x58] sm:$0x1]
        %v252 = vld [vmem:[%s238 + $0x60] sm:$0xff]
        %v253 = vld [vmem:[%s238 + $0x68] sm:$0x1]
        %v254 = vld [vmem:[%s238 + $0x70] sm:$0xff]
        %v255 = vld [vmem:[%s238 + $0x78] sm:$0x1]
        %v256 = vld [vmem:[%s238 + $0x80] sm:$0xff]
        %v257 = vld [vmem:[%s238 + $0x88] sm:$0x1]
        %vm258 = vcmp.ge.f32.partialorder %v240, 0.0
        %vm259 = vcmp.ge.f32.partialorder %v241, 0.0
        %vm260 = vcmp.ge.f32.partialorder %v242, 0.0
        %vm261 = vcmp.ge.f32.partialorder %v243, 0.0
        %vm262 = vcmp.ge.f32.partialorder %v244, 0.0
        %vm263 = vcmp.ge.f32.partialorder %v245, 0.0
        %vm264 = vcmp.ge.f32.partialorder %v246, 0.0
        %vm265 = vcmp.ge.f32.partialorder %v247, 0.0
        %vm266 = vcmp.ge.f32.partialorder %v248, 0.0
        %vm267 = vcmp.ge.f32.partialorder %v249, 0.0
        %vm268 = vcmp.ge.f32.partialorder %v250, 0.0
        %vm269 = vcmp.ge.f32.partialorder %v251, 0.0
        %vm270 = vcmp.ge.f32.partialorder %v252, 0.0
        %vm271 = vcmp.ge.f32.partialorder %v253, 0.0
        %vm272 = vcmp.ge.f32.partialorder %v254, 0.0
        %vm273 = vcmp.ge.f32.partialorder %v255, 0.0
        %vm274 = vcmp.ge.f32.partialorder %v256, 0.0
        %vm275 = vcmp.ge.f32.partialorder %v257, 0.0
        %v276 = vmul.f32 %v240, 0.2
        %v277 = vmul.f32 %v241, 0.2
        %v278 = vmul.f32 %v242, 0.2
        %v279 = vmul.f32 %v243, 0.2
        %v280 = vmul.f32 %v244, 0.2
        %v281 = vmul.f32 %v245, 0.2
        %v282 = vmul.f32 %v246, 0.2
        %v283 = vmul.f32 %v247, 0.2
        %v284 = vmul.f32 %v248, 0.2
        %v285 = vmul.f32 %v249, 0.2
        %v286 = vmul.f32 %v250, 0.2
        %v287 = vmul.f32 %v251, 0.2
        %v288 = vmul.f32 %v252, 0.2
        %v289 = vmul.f32 %v253, 0.2
        %v290 = vmul.f32 %v254, 0.2
        %v291 = vmul.f32 %v255, 0.2
        %v292 = vmul.f32 %v256, 0.2
        %v293 = vmul.f32 %v257, 0.2
        %v294 = vsel %vm258, %v240, %v276
        %v295 = vsel %vm259, %v241, %v277
        %v296 = vsel %vm260, %v242, %v278
        %v297 = vsel %vm261, %v243, %v279
        %v298 = vsel %vm262, %v244, %v280
        %v299 = vsel %vm263, %v245, %v281
        %v300 = vsel %vm264, %v246, %v282
        %v301 = vsel %vm265, %v247, %v283
        %v302 = vsel %vm266, %v248, %v284
        %v303 = vsel %vm267, %v249, %v285
        %v304 = vsel %vm268, %v250, %v286
        %v305 = vsel %vm269, %v251, %v287
        %v306 = vsel %vm270, %v252, %v288
        %v307 = vsel %vm271, %v253, %v289
        %v308 = vsel %vm272, %v254, %v290
        %v309 = vsel %vm273, %v255, %v291
        %v310 = vsel %vm274, %v256, %v292
        %v311 = vsel %vm275, %v257, %v293
        %v312 = vpack.c.bf16 %v295, %v294
        %v313 = vpack.c.bf16 %v297, %v296
        %v314 = vpack.c.bf16 %v299, %v298
        %v315 = vpack.c.bf16 %v301, %v300
        %v316 = vpack.c.bf16 %v303, %v302
        %v317 = vpack.c.bf16 %v305, %v304
        %v318 = vpack.c.bf16 %v307, %v306
        %v319 = vpack.c.bf16 %v309, %v308
        %v320 = vpack.c.bf16 %v311, %v310
        %v321 = vld [vmem:[%s2] sm:$0x1]
        %v323 = vlaneseq
        %v324 = vshrl.u32 %v323, 7
        %v325 = vsub.s32 0, %v324
        %v326 = vrot.slane %v321, %v325
        %v328 = vld [vmem:[%s1] sm:$0xf]
        %v329 = vld [vmem:[%s1 + $0x4] sm:$0xf]
        %v338 = vunpack.c.l.b16 %v312
        %v339 = vunpack.c.l.b16 %v313
        %v340 = vunpack.c.l.b16 %v314
        %v341 = vunpack.c.l.b16 %v315
        %v342 = vunpack.c.l.b16 %v316
        %v343 = vunpack.c.l.b16 %v317
        %v344 = vunpack.c.l.b16 %v318
        %v345 = vunpack.c.l.b16 %v319
        %v346 = vpack.c.b16 %v339, %v338
        %v347 = vpack.c.b16 %v341, %v340
        %v348 = vpack.c.b16 %v343, %v342
        %v349 = vpack.c.b16 %v345, %v344
        %v352 = vunpack.c.l.b16 %v328
        %v353 = vunpack.c.l.b16 %v329
        %v354 = vpack.c.b16 %v353, %v352
        %vm356 = vcmask 130048
        %v358 = vsel %vm356, %v346, 0
        %v361 = vsel %vm356, %v347, 0
        %v364 = vsel %vm356, %v348, 0
        %v367 = vsel %vm356, %v349, 0
        %369 = vmatprep.subr.bf16.mxu0 0
        %370 = vmatpush1.bf16.msra.mxu0 %v354
        %371 = vmatprep.subr.bf16.mxu0 0
        %372 = vmatpush1.bf16.msra.mxu0 0
        %373 = vmatprep.subr.bf16.mxu0 0
        %374 = vmatpush1.bf16.msra.mxu0 0
        %375 = vmatprep.subr.bf16.mxu0 0
        %376 = vmatpush1.bf16.msra.mxu0 0
        %377 = vmatprep.subr.bf16.mxu0 0
        %378 = vmatpush1.bf16.msra.mxu0 0
        %379 = vmatprep.subr.bf16.mxu0 0
        %380 = vmatpush1.bf16.msra.mxu0 0
        %381 = vmatprep.subr.bf16.mxu0 0
        %382 = vmatpush1.bf16.msra.mxu0 0
        %383 = vmatprep.subr.bf16.mxu0 0
        %384 = vmatpush1.bf16.msra.mxu0 0
        %385 = vmatprep.subr.bf16.mxu0 0
        %386 = vmatpush1.bf16.msra.mxu0 0
        %387 = vmatprep.subr.bf16.mxu0 0
        %388 = vmatpush1.bf16.msra.mxu0 0
        %389 = vmatprep.subr.bf16.mxu0 0
        %390 = vmatpush1.bf16.msra.mxu0 0
        %391 = vmatprep.subr.bf16.mxu0 0
        %392 = vmatpush1.bf16.msra.mxu0 0
        %393 = vmatprep.subr.bf16.mxu0 0
        %394 = vmatpush1.bf16.msra.mxu0 0
        %395 = vmatprep.subr.bf16.mxu0 0
        %396 = vmatpush1.bf16.msra.mxu0 0
        %397 = vmatprep.subr.bf16.mxu0 0
        %398 = vmatpush1.bf16.msra.mxu0 0
        %399 = vmatprep.subr.bf16.mxu0 0
        %400 = vmatpush1.bf16.msra.mxu0 0
        %401 = vmatprep.mubr.bf16.mxu0 0
        %402 = vmatmul.mubr.bf16.gmra.mrb[0].mxu0 %v358
        %v403 = vpop.f32.mrb[0].mxu0
        %v404 = vadd.f32 0.0, %v403
        %v405 = vpop.f32.mrb[0].mxu0
        %v406 = vpop.f32.mrb[0].mxu0
        %v407 = vadd.f32 0.0, %v406
        %v408 = vpop.f32.mrb[0].mxu0
        %409 = vmatprep.mubr.bf16.mxu0 0
        %410 = vmatmul.mubr.bf16.gmra.mrb[0].mxu0 %v361
        %v411 = vpop.f32.mrb[0].mxu0
        %v412 = vadd.f32 0.0, %v411
        %v413 = vpop.f32.mrb[0].mxu0
        %v414 = vpop.f32.mrb[0].mxu0
        %v415 = vadd.f32 0.0, %v414
        %v416 = vpop.f32.mrb[0].mxu0
        %417 = vmatprep.mubr.bf16.mxu0 0
        %418 = vmatmul.mubr.bf16.gmra.mrb[0].mxu0 %v364
        %v419 = vpop.f32.mrb[0].mxu0
        %v420 = vadd.f32 0.0, %v419
        %v421 = vpop.f32.mrb[0].mxu0
        %v422 = vpop.f32.mrb[0].mxu0
        %v423 = vadd.f32 0.0, %v422
        %v424 = vpop.f32.mrb[0].mxu0
        %425 = vmatprep.mubr.bf16.mxu0 0
        %426 = vmatmul.mubr.bf16.gmra.mrb[0].mxu0 %v367
        %v427 = vpop.f32.mrb[0].mxu0
        %v428 = vadd.f32 0.0, %v427
        %v429 = vpop.f32.mrb[0].mxu0
        %v430 = vpop.f32.mrb[0].mxu0
        %v431 = vadd.f32 0.0, %v430
        %v432 = vpop.f32.mrb[0].mxu0
        %433 = vdwg.mxu0
        %v434 = vadd.f32 %v326, %v404
        %v435 = vadd.f32 %v326, %v407
        %v436 = vadd.f32 %v326, %v412
        %v437 = vadd.f32 %v326, %v415
        %v438 = vadd.f32 %v326, %v420
        %v439 = vadd.f32 %v326, %v423
        %v440 = vadd.f32 %v326, %v428
        %v441 = vadd.f32 %v326, %v431
        %v442 = vunpack.c.h.b16 %v312
        %v443 = vunpack.c.h.b16 %v313
        %v444 = vunpack.c.h.b16 %v314
        %v445 = vunpack.c.h.b16 %v315
        %v446 = vunpack.c.h.b16 %v316
        %v447 = vunpack.c.h.b16 %v317
        %v448 = vunpack.c.h.b16 %v318
        %v449 = vunpack.c.h.b16 %v319
        %v450 = vpack.c.b16 %v338, %v338
        %v451 = vpack.c.b16 %v442, %v442
        %v452 = vpack.c.b16 %v339, %v339
        %v453 = vpack.c.b16 %v443, %v443
        %v454 = vpack.c.b16 %v340, %v340
        %v455 = vpack.c.b16 %v444, %v444
        %v456 = vpack.c.b16 %v341, %v341
        %v457 = vpack.c.b16 %v445, %v445
        %v458 = vpack.c.b16 %v342, %v342
        %v459 = vpack.c.b16 %v446, %v446
        %v460 = vpack.c.b16 %v343, %v343
        %v461 = vpack.c.b16 %v447, %v447
        %v462 = vpack.c.b16 %v344, %v344
        %v463 = vpack.c.b16 %v448, %v448
        %v464 = vpack.c.b16 %v345, %v345
        %v465 = vpack.c.b16 %v449, %v449
        %vm466 = vsmask.f32 3328
        %vm467 = vsmask.f32 7440
        %vm468 = vmor %vm466, %vm467
        %v470 = vshrl.u32 %v450, 16
        %v472 = vrot.slane %v470, 4
        %v473 = vshll.u32 %v450, 16
        %v475 = vrot.slane %v473, 5
        %v476 = vor.u32 %v472, %v475
        %v477 = vrot.slane %v476, 4
        %v479 = vshll.u32 %v451, 16
        %v481 = vrot.slane %v479, 5
        %v482 = vsel %vm468, %v477, %v481
        %v484 = vshrl.u32 %v452, 16
        %v486 = vrot.slane %v484, 4
        %v487 = vshll.u32 %v452, 16
        %v489 = vrot.slane %v487, 5
        %v490 = vor.u32 %v486, %v489
        %v491 = vrot.slane %v490, 4
        %v493 = vshll.u32 %v453, 16
        %v495 = vrot.slane %v493, 5
        %v496 = vsel %vm468, %v491, %v495
        %v498 = vshrl.u32 %v454, 16
        %v500 = vrot.slane %v498, 4
        %v501 = vshll.u32 %v454, 16
        %v503 = vrot.slane %v501, 5
        %v504 = vor.u32 %v500, %v503
        %v505 = vrot.slane %v504, 4
        %v507 = vshll.u32 %v455, 16
        %v509 = vrot.slane %v507, 5
        %v510 = vsel %vm468, %v505, %v509
        %v512 = vshrl.u32 %v456, 16
        %v514 = vrot.slane %v512, 4
        %v515 = vshll.u32 %v456, 16
        %v517 = vrot.slane %v515, 5
        %v518 = vor.u32 %v514, %v517
        %v519 = vrot.slane %v518, 4
        %v521 = vshll.u32 %v457, 16
        %v523 = vrot.slane %v521, 5
        %v524 = vsel %vm468, %v519, %v523
        %v526 = vshrl.u32 %v458, 16
        %v528 = vrot.slane %v526, 4
        %v529 = vshll.u32 %v458, 16
        %v531 = vrot.slane %v529, 5
        %v532 = vor.u32 %v528, %v531
        %v533 = vrot.slane %v532, 4
        %v535 = vshll.u32 %v459, 16
        %v537 = vrot.slane %v535, 5
        %v538 = vsel %vm468, %v533, %v537
        %v540 = vshrl.u32 %v460, 16
        %v542 = vrot.slane %v540, 4
        %v543 = vshll.u32 %v460, 16
        %v545 = vrot.slane %v543, 5
        %v546 = vor.u32 %v542, %v545
        %v547 = vrot.slane %v546, 4
        %v549 = vshll.u32 %v461, 16
        %v551 = vrot.slane %v549, 5
        %v552 = vsel %vm468, %v547, %v551
        %v554 = vshrl.u32 %v462, 16
        %v556 = vrot.slane %v554, 4
        %v557 = vshll.u32 %v462, 16
        %v559 = vrot.slane %v557, 5
        %v560 = vor.u32 %v556, %v559
        %v561 = vrot.slane %v560, 4
        %v563 = vshll.u32 %v463, 16
        %v565 = vrot.slane %v563, 5
        %v566 = vsel %vm468, %v561, %v565
        %v568 = vshrl.u32 %v464, 16
        %v570 = vrot.slane %v568, 4
        %v571 = vshll.u32 %v464, 16
        %v573 = vrot.slane %v571, 5
        %v574 = vor.u32 %v570, %v573
        %v575 = vrot.slane %v574, 4
        %v577 = vshll.u32 %v465, 16
        %v579 = vrot.slane %v577, 5
        %v580 = vsel %vm468, %v575, %v579
        %s581 = scalar_lea.vmem %s1, 8
        %v582 = vld [vmem:[%s581] sm:$0xf]
        %v583 = vld [vmem:[%s581 + $0x4] sm:$0xf]
        %v584 = vunpack.c.l.b16 %v482
        %v585 = vunpack.c.l.b16 %v496
        %v586 = vunpack.c.l.b16 %v510
        %v587 = vunpack.c.l.b16 %v524
        %v588 = vunpack.c.l.b16 %v538
        %v589 = vunpack.c.l.b16 %v552
        %v590 = vunpack.c.l.b16 %v566
        %v591 = vunpack.c.l.b16 %v580
        %v592 = vpack.c.b16 %v585, %v584
        %v593 = vpack.c.b16 %v587, %v586
        %v594 = vpack.c.b16 %v589, %v588
        %v595 = vpack.c.b16 %v591, %v590
        %v598 = vunpack.c.l.b16 %v582
        %v599 = vunpack.c.l.b16 %v583
        %v600 = vpack.c.b16 %v599, %v598
        %v603 = vsel %vm356, %v592, 0
        %v606 = vsel %vm356, %v593, 0
        %v609 = vsel %vm356, %v594, 0
        %v612 = vsel %vm356, %v595, 0
        %614 = vmatprep.subr.bf16.mxu0 0
        %615 = vmatpush1.bf16.msra.mxu0 %v600
        %616 = vmatprep.subr.bf16.mxu0 0
        %617 = vmatpush1.bf16.msra.mxu0 0
        %618 = vmatprep.subr.bf16.mxu0 0
        %619 = vmatpush1.bf16.msra.mxu0 0
        %620 = vmatprep.subr.bf16.mxu0 0
        %621 = vmatpush1.bf16.msra.mxu0 0
        %622 = vmatprep.subr.bf16.mxu0 0
        %623 = vmatpush1.bf16.msra.mxu0 0
        %624 = vmatprep.subr.bf16.mxu0 0
        %625 = vmatpush1.bf16.msra.mxu0 0
        %626 = vmatprep.subr.bf16.mxu0 0
        %627 = vmatpush1.bf16.msra.mxu0 0
        %628 = vmatprep.subr.bf16.mxu0 0
        %629 = vmatpush1.bf16.msra.mxu0 0
        %630 = vmatprep.subr.bf16.mxu0 0
        %631 = vmatpush1.bf16.msra.mxu0 0
        %632 = vmatprep.subr.bf16.mxu0 0
        %633 = vmatpush1.bf16.msra.mxu0 0
        %634 = vmatprep.subr.bf16.mxu0 0
        %635 = vmatpush1.bf16.msra.mxu0 0
        %636 = vmatprep.subr.bf16.mxu0 0
        %637 = vmatpush1.bf16.msra.mxu0 0
        %638 = vmatprep.subr.bf16.mxu0 0
        %639 = vmatpush1.bf16.msra.mxu0 0
        %640 = vmatprep.subr.bf16.mxu0 0
        %641 = vmatpush1.bf16.msra.mxu0 0
        %642 = vmatprep.subr.bf16.mxu0 0
        %643 = vmatpush1.bf16.msra.mxu0 0
        %644 = vmatprep.subr.bf16.mxu0 0
        %645 = vmatpush1.bf16.msra.mxu0 0
        %646 = vmatprep.mubr.bf16.mxu0 0
        %647 = vmatmul.mubr.bf16.gmra.mrb[0].mxu0 %v603
        %v648 = vpop.f32.mrb[0].mxu0
        %v649 = vadd.f32 0.0, %v648
        %v650 = vpop.f32.mrb[0].mxu0
        %v651 = vpop.f32.mrb[0].mxu0
        %v652 = vadd.f32 0.0, %v651
        %v653 = vpop.f32.mrb[0].mxu0
        %654 = vmatprep.mubr.bf16.mxu0 0
        %655 = vmatmul.mubr.bf16.gmra.mrb[0].mxu0 %v606
        %v656 = vpop.f32.mrb[0].mxu0
        %v657 = vadd.f32 0.0, %v656
        %v658 = vpop.f32.mrb[0].mxu0
        %v659 = vpop.f32.mrb[0].mxu0
        %v660 = vadd.f32 0.0, %v659
        %v661 = vpop.f32.mrb[0].mxu0
        %662 = vmatprep.mubr.bf16.mxu0 0
        %663 = vmatmul.mubr.bf16.gmra.mrb[0].mxu0 %v609
        %v664 = vpop.f32.mrb[0].mxu0
        %v665 = vadd.f32 0.0, %v664
        %v666 = vpop.f32.mrb[0].mxu0
        %v667 = vpop.f32.mrb[0].mxu0
        %v668 = vadd.f32 0.0, %v667
        %v669 = vpop.f32.mrb[0].mxu0
        %670 = vmatprep.mubr.bf16.mxu0 0
        %671 = vmatmul.mubr.bf16.gmra.mrb[0].mxu0 %v612
        %v672 = vpop.f32.mrb[0].mxu0
        %v673 = vadd.f32 0.0, %v672
        %v674 = vpop.f32.mrb[0].mxu0
        %v675 = vpop.f32.mrb[0].mxu0
        %v676 = vadd.f32 0.0, %v675
        %v677 = vpop.f32.mrb[0].mxu0
        %678 = vdwg.mxu0
        %v679 = vadd.f32 %v434, %v649
        %v680 = vadd.f32 %v435, %v652
        %v681 = vadd.f32 %v436, %v657
        %v682 = vadd.f32 %v437, %v660
        %v683 = vadd.f32 %v438, %v665
        %v684 = vadd.f32 %v439, %v668
        %v685 = vadd.f32 %v440, %v673
        %v686 = vadd.f32 %v441, %v676
        %s687 = scalar_lea.vmem %s1, 16
        %v688 = vld [vmem:[%s687] sm:$0xf]
        %v689 = vld [vmem:[%s687 + $0x4] sm:$0xf]
        %v691 = vunpack.c.l.b16 %v320
        %v692 = vpack.c.b16 %v340, %v339
        %v693 = vpack.c.b16 %v342, %v341
        %v694 = vpack.c.b16 %v344, %v343
        %v695 = vpack.c.b16 %v691, %v345
        %v698 = vunpack.c.l.b16 %v688
        %v699 = vunpack.c.l.b16 %v689
        %v700 = vpack.c.b16 %v699, %v698
        %v703 = vsel %vm356, %v692, 0
        %v706 = vsel %vm356, %v693, 0
        %v709 = vsel %vm356, %v694, 0
        %v712 = vsel %vm356, %v695, 0
        %714 = vmatprep.subr.bf16.mxu0 0
        %715 = vmatpush1.bf16.msra.mxu0 %v700
        %716 = vmatprep.subr.bf16.mxu0 0
        %717 = vmatpush1.bf16.msra.mxu0 0
        %718 = vmatprep.subr.bf16.mxu0 0
        %719 = vmatpush1.bf16.msra.mxu0 0
        %720 = vmatprep.subr.bf16.mxu0 0
        %721 = vmatpush1.bf16.msra.mxu0 0
        %722 = vmatprep.subr.bf16.mxu0 0
        %723 = vmatpush1.bf16.msra.mxu0 0
        %724 = vmatprep.subr.bf16.mxu0 0
        %725 = vmatpush1.bf16.msra.mxu0 0
        %726 = vmatprep.subr.bf16.mxu0 0
        %727 = vmatpush1.bf16.msra.mxu0 0
        %728 = vmatprep.subr.bf16.mxu0 0
        %729 = vmatpush1.bf16.msra.mxu0 0
        %730 = vmatprep.subr.bf16.mxu0 0
        %731 = vmatpush1.bf16.msra.mxu0 0
        %732 = vmatprep.subr.bf16.mxu0 0
        %733 = vmatpush1.bf16.msra.mxu0 0
        %734 = vmatprep.subr.bf16.mxu0 0
        %735 = vmatpush1.bf16.msra.mxu0 0
        %736 = vmatprep.subr.bf16.mxu0 0
        %737 = vmatpush1.bf16.msra.mxu0 0
        %738 = vmatprep.subr.bf16.mxu0 0
        %739 = vmatpush1.bf16.msra.mxu0 0
        %740 = vmatprep.subr.bf16.mxu0 0
        %741 = vmatpush1.bf16.msra.mxu0 0
        %742 = vmatprep.subr.bf16.mxu0 0
        %743 = vmatpush1.bf16.msra.mxu0 0
        %744 = vmatprep.subr.bf16.mxu0 0
        %745 = vmatpush1.bf16.msra.mxu0 0
        %746 = vmatprep.mubr.bf16.mxu0 0
        %747 = vmatmul.mubr.bf16.gmra.mrb[0].mxu0 %v703
        %v748 = vpop.f32.mrb[0].mxu0
        %v749 = vadd.f32 0.0, %v748
        %v750 = vpop.f32.mrb[0].mxu0
        %v751 = vpop.f32.mrb[0].mxu0
        %v752 = vadd.f32 0.0, %v751
        %v753 = vpop.f32.mrb[0].mxu0
        %754 = vmatprep.mubr.bf16.mxu0 0
        %755 = vmatmul.mubr.bf16.gmra.mrb[0].mxu0 %v706
        %v756 = vpop.f32.mrb[0].mxu0
        %v757 = vadd.f32 0.0, %v756
        %v758 = vpop.f32.mrb[0].mxu0
        %v759 = vpop.f32.mrb[0].mxu0
        %v760 = vadd.f32 0.0, %v759
        %v761 = vpop.f32.mrb[0].mxu0
        %762 = vmatprep.mubr.bf16.mxu0 0
        %763 = vmatmul.mubr.bf16.gmra.mrb[0].mxu0 %v709
        %v764 = vpop.f32.mrb[0].mxu0
        %v765 = vadd.f32 0.0, %v764
        %v766 = vpop.f32.mrb[0].mxu0
        %v767 = vpop.f32.mrb[0].mxu0
        %v768 = vadd.f32 0.0, %v767
        %v769 = vpop.f32.mrb[0].mxu0
        %770 = vmatprep.mubr.bf16.mxu0 0
        %771 = vmatmul.mubr.bf16.gmra.mrb[0].mxu0 %v712
        %v772 = vpop.f32.mrb[0].mxu0
        %v773 = vadd.f32 0.0, %v772
        %v774 = vpop.f32.mrb[0].mxu0
        %v775 = vpop.f32.mrb[0].mxu0
        %v776 = vadd.f32 0.0, %v775
        %v777 = vpop.f32.mrb[0].mxu0
        %778 = vdwg.mxu0
        %v779 = vadd.f32 %v679, %v749
        %v780 = vadd.f32 %v680, %v752
        %v781 = vadd.f32 %v681, %v757
        %v782 = vadd.f32 %v682, %v760
        %v783 = vadd.f32 %v683, %v765
        %v784 = vadd.f32 %v684, %v768
        %v785 = vadd.f32 %v685, %v773
        %v786 = vadd.f32 %v686, %v776
        %v787 = vunpack.c.h.b16 %v320
        %v788 = vpack.c.b16 %v691, %v691
        %v789 = vpack.c.b16 %v787, %v787
        %v791 = vshrl.u32 %v788, 16
        %v793 = vrot.slane %v791, 4
        %v794 = vshll.u32 %v788, 16
        %v796 = vrot.slane %v794, 5
        %v797 = vor.u32 %v793, %v796
        %v798 = vrot.slane %v797, 4
        %v800 = vshll.u32 %v789, 16
        %v802 = vrot.slane %v800, 5
        %v803 = vsel %vm468, %v798, %v802
        %s804 = scalar_lea.vmem %s1, 24
        %v805 = vld [vmem:[%s804] sm:$0xf]
        %v806 = vld [vmem:[%s804 + $0x4] sm:$0xf]
        %v807 = vunpack.c.l.b16 %v803
        %v808 = vpack.c.b16 %v586, %v585
        %v809 = vpack.c.b16 %v588, %v587
        %v810 = vpack.c.b16 %v590, %v589
        %v811 = vpack.c.b16 %v807, %v591
        %v814 = vunpack.c.l.b16 %v805
        %v815 = vunpack.c.l.b16 %v806
        %v816 = vpack.c.b16 %v815, %v814
        %v819 = vsel %vm356, %v808, 0
        %v822 = vsel %vm356, %v809, 0
        %v825 = vsel %vm356, %v810, 0
        %v828 = vsel %vm356, %v811, 0
        %830 = vmatprep.subr.bf16.mxu0 0
        %831 = vmatpush1.bf16.msra.mxu0 %v816
        %832 = vmatprep.subr.bf16.mxu0 0
        %833 = vmatpush1.bf16.msra.mxu0 0
        %834 = vmatprep.subr.bf16.mxu0 0
        %835 = vmatpush1.bf16.msra.mxu0 0
        %836 = vmatprep.subr.bf16.mxu0 0
        %837 = vmatpush1.bf16.msra.mxu0 0
        %838 = vmatprep.subr.bf16.mxu0 0
        %839 = vmatpush1.bf16.msra.mxu0 0
        %840 = vmatprep.subr.bf16.mxu0 0
        %841 = vmatpush1.bf16.msra.mxu0 0
        %842 = vmatprep.subr.bf16.mxu0 0
        %843 = vmatpush1.bf16.msra.mxu0 0
        %844 = vmatprep.subr.bf16.mxu0 0
        %845 = vmatpush1.bf16.msra.mxu0 0
        %846 = vmatprep.subr.bf16.mxu0 0
        %847 = vmatpush1.bf16.msra.mxu0 0
        %848 = vmatprep.subr.bf16.mxu0 0
        %849 = vmatpush1.bf16.msra.mxu0 0
        %850 = vmatprep.subr.bf16.mxu0 0
        %851 = vmatpush1.bf16.msra.mxu0 0
        %852 = vmatprep.subr.bf16.mxu0 0
        %853 = vmatpush1.bf16.msra.mxu0 0
        %854 = vmatprep.subr.bf16.mxu0 0
        %855 = vmatpush1.bf16.msra.mxu0 0
        %856 = vmatprep.subr.bf16.mxu0 0
        %857 = vmatpush1.bf16.msra.mxu0 0
        %858 = vmatprep.subr.bf16.mxu0 0
        %859 = vmatpush1.bf16.msra.mxu0 0
        %860 = vmatprep.subr.bf16.mxu0 0
        %861 = vmatpush1.bf16.msra.mxu0 0
        %862 = vmatprep.mubr.bf16.mxu0 0
        %863 = vmatmul.mubr.bf16.gmra.mrb[0].mxu0 %v819
        %v864 = vpop.f32.mrb[0].mxu0
        %v865 = vadd.f32 0.0, %v864
        %v866 = vpop.f32.mrb[0].mxu0
        %v867 = vpop.f32.mrb[0].mxu0
        %v868 = vadd.f32 0.0, %v867
        %v869 = vpop.f32.mrb[0].mxu0
        %870 = vmatprep.mubr.bf16.mxu0 0
        %871 = vmatmul.mubr.bf16.gmra.mrb[0].mxu0 %v822
        %v872 = vpop.f32.mrb[0].mxu0
        %v873 = vadd.f32 0.0, %v872
        %v874 = vpop.f32.mrb[0].mxu0
        %v875 = vpop.f32.mrb[0].mxu0
        %v876 = vadd.f32 0.0, %v875
        %v877 = vpop.f32.mrb[0].mxu0
        %878 = vmatprep.mubr.bf16.mxu0 0
        %879 = vmatmul.mubr.bf16.gmra.mrb[0].mxu0 %v825
        %v880 = vpop.f32.mrb[0].mxu0
        %v881 = vadd.f32 0.0, %v880
        %v882 = vpop.f32.mrb[0].mxu0
        %v883 = vpop.f32.mrb[0].mxu0
        %v884 = vadd.f32 0.0, %v883
        %v885 = vpop.f32.mrb[0].mxu0
        %886 = vmatprep.mubr.bf16.mxu0 0
        %887 = vmatmul.mubr.bf16.gmra.mrb[0].mxu0 %v828
        %v888 = vpop.f32.mrb[0].mxu0
        %v889 = vadd.f32 0.0, %v888
        %v890 = vpop.f32.mrb[0].mxu0
        %v891 = vpop.f32.mrb[0].mxu0
        %v892 = vadd.f32 0.0, %v891
        %v893 = vpop.f32.mrb[0].mxu0
        %894 = vdwg.mxu0
        %v895 = vadd.f32 %v779, %v865
        %v896 = vadd.f32 %v780, %v868
        %v897 = vadd.f32 %v781, %v873
        %v898 = vadd.f32 %v782, %v876
        %v899 = vadd.f32 %v783, %v881
        %v900 = vadd.f32 %v784, %v884
        %v901 = vadd.f32 %v785, %v889
        %v902 = vadd.f32 %v786, %v892
        %vm903 = vcmask 64512
        %904 = vst.msk [vmem:[%s221] sm:$0xff] %vm903, %v895
        %905 = vst.msk [vmem:[%s221 + $0x8] sm:$0xff] %vm903, %v896
        %906 = vst.msk [vmem:[%s221 + $0x10] sm:$0xff] %vm903, %v897
        %907 = vst.msk [vmem:[%s221 + $0x18] sm:$0xff] %vm903, %v898
        %908 = vst.msk [vmem:[%s221 + $0x20] sm:$0xff] %vm903, %v899
        %909 = vst.msk [vmem:[%s221 + $0x28] sm:$0xff] %vm903, %v900
        %910 = vst.msk [vmem:[%s221 + $0x30] sm:$0xff] %vm903, %v901
        %911 = vst.msk [vmem:[%s221 + $0x38] sm:$0xff] %vm903, %v902
        %v912 = vsel %vm903, %v895, 0.0
        %v913 = vsel %vm903, %v896, 0.0
        %v914 = vadd.f32 %v912, %v913
        %v915 = vsel %vm903, %v897, 0.0
        %v916 = vadd.f32 %v914, %v915
        %v917 = vsel %vm903, %v898, 0.0
        %v918 = vadd.f32 %v916, %v917
        %v919 = vsel %vm903, %v899, 0.0
        %v920 = vadd.f32 %v918, %v919
        %v921 = vsel %vm903, %v900, 0.0
        %v922 = vadd.f32 %v920, %v921
        %v923 = vsel %vm903, %v901, 0.0
        %v924 = vadd.f32 %v922, %v923
        %v925 = vsel %vm903, %v902, 0.0
        %v926 = vadd.f32 %v924, %v925
        %v927 = vrot.slane %v926, 4
        %v928 = vadd.f32 %v926, %v927
        %v929 = vrot.slane %v928, 2
        %v930 = vadd.f32 %v928, %v929
        %v931 = vrot.slane %v930, 1
        %v932 = vadd.f32 %v930, %v931
        %vm933 = vcmask 57344
        %934 = vst.msk [vmem:[%s227] sm:$0x1] %vm933, %v932
        %v935 = vmul.f32 %v895, %v895
        %v936 = vmul.f32 %v896, %v896
        %v937 = vmul.f32 %v897, %v897
        %v938 = vmul.f32 %v898, %v898
        %v939 = vmul.f32 %v899, %v899
        %v940 = vmul.f32 %v900, %v900
        %v941 = vmul.f32 %v901, %v901
        %v942 = vmul.f32 %v902, %v902
        %v943 = vsel %vm903, %v935, 0.0
        %v944 = vsel %vm903, %v936, 0.0
        %v945 = vadd.f32 %v943, %v944
        %v946 = vsel %vm903, %v937, 0.0
        %v947 = vadd.f32 %v945, %v946
        %v948 = vsel %vm903, %v938, 0.0
        %v949 = vadd.f32 %v947, %v948
        %v950 = vsel %vm903, %v939, 0.0
        %v951 = vadd.f32 %v949, %v950
        %v952 = vsel %vm903, %v940, 0.0
        %v953 = vadd.f32 %v951, %v952
        %v954 = vsel %vm903, %v941, 0.0
        %v955 = vadd.f32 %v953, %v954
        %v956 = vsel %vm903, %v942, 0.0
        %v957 = vadd.f32 %v955, %v956
        %v958 = vrot.slane %v957, 4
        %v959 = vadd.f32 %v957, %v958
        %v960 = vrot.slane %v959, 2
        %v961 = vadd.f32 %v959, %v960
        %v962 = vrot.slane %v961, 1
        %v963 = vadd.f32 %v961, %v962
        %964 = vst.msk [vmem:[%s233] sm:$0x1] %vm933, %v963
        %s965 = sand.u32 %s99, 1
        %s966 = scalar_lea.sflag [#allocation3], %s965
        %s967 = sand.u32 %s99, 1
        %s968 = smul.addr %s967, 64
        %s969 = scalar_lea.vmem [#allocation2], %s968
        %s970 = sand.u32 %s23, 1
        %s971 = scalar_lea.sflag [#allocation5], %s970
        %s972 = sand.u32 %s125, 1
        %s973 = scalar_lea.vmem [#allocation4], %s972
        %s974 = sand.u32 %s23, 1
        %s975 = scalar_lea.sflag [#allocation5], %s974
        %s976 = sand.u32 %s151, 1
        %s977 = scalar_lea.vmem [#allocation6], %s976
        // Predicated region
        $region33: #{tpu_custom_call.1} parent=31 // pred_check
          %p978 = pneg %p109
        $region34: #{tpu_custom_call.1} parent=31 // pred_check_branch
          %980 = sbr.rel (%p978) target = $region36
        $region35: #{tpu_custom_call.1} parent=31 // pred_region
          %s982 = ssub.s32 1024, 1024
          %983 = vsyncadd %s966, %s982
          %s984 = smul.addr %s23, 8
          %s985 = smul.addr %s984, 128
          %s986 = scalar_lea.hbm %s3, %s985
          %s987 = sshll.u32 %s969, 4
          %s988 = int_to_ptr.vmem [resolvable:$true] %s987
          %993 = dma.vmem_to_hbm [thread:$0]  %s988, 1024, %s986, %s966, 128, 128, 8
        $region36: #{tpu_custom_call.1} parent=31 // pred_fallthru
          _
        // Predicated region
        $region37: #{tpu_custom_call.1} parent=31 // pred_check
          %p994 = pneg %p135
        $region38: #{tpu_custom_call.1} parent=31 // pred_check_branch
          %996 = sbr.rel (%p994) target = $region40
        $region39: #{tpu_custom_call.1} parent=31 // pred_region
          %s998 = ssub.s32 16, 16
          %999 = vsyncadd %s971, %s998
          %s1000 = smul.addr %s23, 16
          %s1001 = scalar_lea.hbm %s4, %s1000
          %s1003 = sshll.u32 %s973, 4
          %s1004 = int_to_ptr.vmem [resolvable:$true] %s1003
          %1006 = dma.vmem_to_hbm [thread:$0]  %s1004, 16, %s1001, %s971
        $region40: #{tpu_custom_call.1} parent=31 // pred_fallthru
          _
        // Predicated region
        $region41: #{tpu_custom_call.1} parent=31 // pred_check
          %p1007 = pneg %p161
        $region42: #{tpu_custom_call.1} parent=31 // pred_check_branch
          %1009 = sbr.rel (%p1007) target = $region44
        $region43: #{tpu_custom_call.1} parent=31 // pred_region
          %s1011 = ssub.s32 16, 16
          %1012 = vsyncadd %s975, %s1011
          %s1013 = smul.addr %s23, 16
          %s1014 = scalar_lea.hbm %s5, %s1013
          %s1016 = sshll.u32 %s977, 4
          %s1017 = int_to_ptr.vmem [resolvable:$true] %s1016
          %1019 = dma.vmem_to_hbm [thread:$0]  %s1017, 16, %s1014, %s975
        $region44: #{tpu_custom_call.1} parent=31 // pred_fallthru
          _
      $region32: #{tpu_custom_call.1} parent=5 // pred_fallthru
        _
      %p1020 = scmp.le.s32.totalorder 2, %s18
      // Predicated region
      $region45: #{tpu_custom_call.1} parent=5 // pred_check
        %p1021 = pneg %p1020
      $region46: #{tpu_custom_call.1} parent=5 // pred_check_branch
        %1023 = sbr.rel (%p1021) target = $region48
      $region47: #{tpu_custom_call.1} parent=5 // pred_region
        %s1024 = ssub.s32 %s18, 2
        // Predicated region
        $region49: #{tpu_custom_call.1} parent=47 // pred_check
          %p1025 = pneg %p115
        $region50: #{tpu_custom_call.1} parent=47 // pred_check_branch
          %1027 = sbr.rel (%p1025) target = $region52
        $region51: #{tpu_custom_call.1} parent=47 // pred_region
          %s1028 = sand.u32 %s100, 1
          %s1029 = scalar_lea.sflag [#allocation3], %s1028
          %s1030 = sand.u32 %s100, 1
          %s1031 = smul.addr %s1030, 64
          %s1032 = scalar_lea.vmem [#allocation2], %s1031
          %1033 = dma.done %s1029, 1024
        $region52: #{tpu_custom_call.1} parent=47 // pred_fallthru
          _
        // Predicated region
        $region53: #{tpu_custom_call.1} parent=47 // pred_check
          %p1034 = pneg %p141
        $region54: #{tpu_custom_call.1} parent=47 // pred_check_branch
          %1036 = sbr.rel (%p1034) target = $region56
        $region55: #{tpu_custom_call.1} parent=47 // pred_region
          %s1037 = sand.u32 %s24, 1
          %s1038 = scalar_lea.sflag [#allocation5], %s1037
          %s1039 = sand.u32 %s126, 1
          %s1040 = scalar_lea.vmem [#allocation4], %s1039
          %1041 = dma.done %s1038, 16
        $region56: #{tpu_custom_call.1} parent=47 // pred_fallthru
          _
        // Predicated region
        $region57: #{tpu_custom_call.1} parent=47 // pred_check
          %p1042 = pneg %p167
        $region58: #{tpu_custom_call.1} parent=47 // pred_check_branch
          %1044 = sbr.rel (%p1042) target = $region60
        $region59: #{tpu_custom_call.1} parent=47 // pred_region
          %s1045 = sand.u32 %s24, 1
          %s1046 = scalar_lea.sflag [#allocation5], %s1045
          %s1047 = sand.u32 %s152, 1
          %s1048 = scalar_lea.vmem [#allocation6], %s1047
          %1049 = dma.done %s1046, 16
        $region60: #{tpu_custom_call.1} parent=47 // pred_fallthru
          _
      $region48: #{tpu_custom_call.1} parent=5 // pred_fallthru
        _
    $region6: #{tpu_custom_call.1} parent=1 // loop_footer
      %s22 = sadd.s32 1, %s18
    $region7: #{tpu_custom_call.1} parent=1 // loop_footer_branch
      %17 = sbr.rel target = $region3
    $region8: #{tpu_custom_call.1} parent=1 // loop_exit
      _
    %1050 = vsyncpa [#allocation3], 1
    %s1051 = scalar_lea.sflag [#allocation3], 1
    %1052 = vsyncpa %s1051, 1
    %1053 = vsyncpa [#allocation5], 1
    %s1054 = scalar_lea.sflag [#allocation5], 1
    %1055 = vsyncpa %s1054, 1

</llo_original>
